<compile_context>
chip_gen: v5e
topology: v5e:2x2
jax: 0.10.0
libtpu: 0.0.40
codegen_flags: <defaults>
</compile_context>

<pallas_src>
import jax
import jax.numpy as jnp
from jax.experimental import pallas as pl
from jax.experimental.pallas import tpu as pltpu

KPAD = 8        # fc1 contraction padded to one sublane tile
TM_CAP = 2048   # max batch-lanes per grid step (VMEM-safe on v5e/v7x)


def garchnet_kernel(x_ref, w1_ref, c1_ref, w2_ref, c2_ref, w3_ref, b3_ref, o_ref):
    # Everything runs transposed: batch is the lane (minor) axis, so every
    # intermediate and the final store are lane-dense.

    # fc1 + folded bn1 + relu.  w1: (hidden, 8) f32, x: (8, tm) f32, the
    # padding rows/cols are exact zeros, so the depth-8 MXU dot is exact.
    h = jnp.dot(w1_ref[...], x_ref[...], preferred_element_type=jnp.float32)
    h = jnp.maximum(h + c1_ref[...], 0.0)                      # (hidden, tm)

    # dropout(p=0.3): identity in eval mode.

    # fc2 + folded bn2 + relu: bf16 MXU operands, f32 accumulate.
    h = jnp.dot(w2_ref[...], h.astype(jnp.bfloat16),
                preferred_element_type=jnp.float32)
    h = jnp.maximum(h + c2_ref[...], 0.0)                      # (hidden, tm)

    # fc3: (1, hidden) @ (hidden, tm) -> lane-dense (1, tm) output row.
    y = jnp.dot(w3_ref[...], h.astype(jnp.bfloat16),
                preferred_element_type=jnp.float32)
    o_ref[...] = (y + b3_ref[...]).astype(o_ref.dtype)


def fold_params(params, eps=1e-5):
    """One-time fold of eval-mode BN affine + linear biases, stored transposed."""
    def fold(w, b, gamma, beta, mean, var):
        scale = gamma / jnp.sqrt(var + eps)
        wf = w * scale[None, :]                       # BN scale into weight cols
        c = b * scale + (beta - mean * scale)         # bias*scale + BN shift
        return wf, c

    w1f, c1 = fold(params["w1"], params["b1"], params["bn1_g"], params["bn1_b"],
                   params["bn1_m"], params["bn1_v"])
    w2f, c2 = fold(params["w2"], params["b2"], params["bn2_g"], params["bn2_b"],
                   params["bn2_m"], params["bn2_v"])

    in_dim, hidden = w1f.shape
    # Transposed, contraction-padded fc1 weight: (hidden, KPAD), extra cols zero.
    w1t = jnp.zeros((hidden, KPAD), jnp.float32).at[:, :in_dim].set(w1f.T)
    c1t = c1.reshape(hidden, 1).astype(jnp.float32)
    w2t = w2f.T.astype(jnp.bfloat16)                  # (hidden, hidden) bf16
    c2t = c2.reshape(hidden, 1).astype(jnp.float32)
    w3t = params["w3"].T.astype(jnp.bfloat16)         # (1, hidden) bf16
    b3 = params["b3"].reshape(1, 1).astype(jnp.float32)
    return dict(w1t=w1t, c1t=c1t, w2t=w2t, c2t=c2t, w3t=w3t, b3=b3, in_dim=in_dim)


def _round_up(a, b):
    return ((a + b - 1) // b) * b


def garchnet_forward(x, fp):
    """x: (N, input_dim) float32 -> (N, 1) float32 (eval-mode forward)."""
    n, in_dim = x.shape
    hidden = fp["w2t"].shape[0]

    # Batch tiles live on the lane axis -> multiples of 128.  Pick tm so the
    # grid has >= 2 steps whenever possible (v7x 2-TC sharding), capped for VMEM.
    n_pad = _round_up(max(n, 128), 128)
    tm = 128 if n_pad <= 128 else min(_round_up(pl.cdiv(n_pad, 2), 128), TM_CAP)
    n_pad = _round_up(n_pad, tm)
    grid = (n_pad // tm,)

    # Transpose + zero-pad x to (KPAD, n_pad): padded rows/cols are exact zeros.
    # (Padded batch lanes still produce f(0) garbage in out[:, n:]; sliced away.)
    xt = jnp.zeros((KPAD, n_pad), jnp.float32).at[:in_dim, :n].set(x.T)

    batch_map = lambda i: (0, i)
    const_map = lambda i: (0, 0)

    out = pl.pallas_call(
        garchnet_kernel,
        grid=grid,
        in_specs=[
            pl.BlockSpec((KPAD, tm), batch_map),       # x (transposed, padded)
            pl.BlockSpec((hidden, KPAD), const_map),   # w1 (bn1 scale folded)
            pl.BlockSpec((hidden, 1), const_map),      # c1
            pl.BlockSpec((hidden, hidden), const_map), # w2 (bn2 scale folded, bf16)
            pl.BlockSpec((hidden, 1), const_map),      # c2
            pl.BlockSpec((1, hidden), const_map),      # w3 (bf16)
            pl.BlockSpec((1, 1), const_map),           # b3
        ],
        out_specs=pl.BlockSpec((1, tm), batch_map),
        out_shape=jax.ShapeDtypeStruct((1, n_pad), jnp.float32),
        compiler_params=pltpu.CompilerParams(
            dimension_semantics=("parallel",),
            vmem_limit_bytes=32 * 1024 * 1024),
    )(xt, fp["w1t"], fp["c1t"], fp["w2t"], fp["c2t"], fp["w3t"], fp["b3"])

    return out[0, :n].reshape(n, 1)


def init_params(key, input_dim=3, hidden_dim=128):
    """Deterministic init mimicking PyTorch Linear defaults; fresh BN stats."""
    ks = jax.random.split(key, 6)

    def linear(kw, kb, fan_in, fan_out):
        bound = 1.0 / jnp.sqrt(fan_in)
        # Stored transposed: (in, out), so y = x @ w + b.
        w = jax.random.uniform(kw, (fan_in, fan_out), jnp.float32, -bound, bound)
        b = jax.random.uniform(kb, (fan_out,), jnp.float32, -bound, bound)
        return w, b

    w1, b1 = linear(ks[0], ks[1], input_dim, hidden_dim)
    w2, b2 = linear(ks[2], ks[3], hidden_dim, hidden_dim)
    w3, b3 = linear(ks[4], ks[5], hidden_dim, 1)

    return dict(
        w1=w1, b1=b1,
        bn1_g=jnp.ones((hidden_dim,), jnp.float32),
        bn1_b=jnp.zeros((hidden_dim,), jnp.float32),
        bn1_m=jnp.zeros((hidden_dim,), jnp.float32),
        bn1_v=jnp.ones((hidden_dim,), jnp.float32),
        w2=w2, b2=b2,
        bn2_g=jnp.ones((hidden_dim,), jnp.float32),
        bn2_b=jnp.zeros((hidden_dim,), jnp.float32),
        bn2_m=jnp.zeros((hidden_dim,), jnp.float32),
        bn2_v=jnp.ones((hidden_dim,), jnp.float32),
        w3=w3, b3=b3,
    )


def reference_forward(x, params, eps=1e-5):
    """Pure-JAX f32 reference of the same eval-mode forward."""
    h = x @ params["w1"] + params["b1"]
    h = (h - params["bn1_m"]) / jnp.sqrt(params["bn1_v"] + eps) * params["bn1_g"] + params["bn1_b"]
    h = jnp.maximum(h, 0.0)
    h = h @ params["w2"] + params["b2"]
    h = (h - params["bn2_m"]) / jnp.sqrt(params["bn2_v"] + eps) * params["bn2_g"] + params["bn2_b"]
    h = jnp.maximum(h, 0.0)
    return h @ params["w3"] + params["b3"]


if __name__ == "__main__":
    key = jax.random.PRNGKey(0)
    k_param, k_x1, k_x2 = jax.random.split(key, 3)

    input_dim, hidden_dim = 3, 128
    params = init_params(k_param, input_dim, hidden_dim)
    folded = fold_params(params)          # one-time constant fold

    # Small single-step case (batch=8).
    x1 = jax.random.normal(k_x1, (8, input_dim), jnp.float32)
    out1 = jax.block_until_ready(garchnet_forward(x1, folded))
    ref1 = reference_forward(x1, params)
    assert out1.shape == (8, 1), out1.shape
    # bf16 MXU operands (f32 accumulate) -> widened tolerance vs the f32 reference.
    assert jnp.allclose(out1, ref1, atol=3e-2, rtol=3e-2), (out1, ref1)

    # Non-multiple batch exercising padding + a 2-step grid (v7x 2-TC path).
    x2 = jax.random.normal(k_x2, (300, input_dim), jnp.float32)
    out2 = jax.block_until_ready(garchnet_forward(x2, folded))
    ref2 = reference_forward(x2, params)
    assert out2.shape == (300, 1), out2.shape
    assert jnp.allclose(out2, ref2, atol=3e-2, rtol=3e-2)

    print("KERNEL_OK")
</pallas_src>

<mosaic_0001>
module attributes {stable_mosaic.version = 11 : i64} {
  func.func @garchnet_kernel(%arg0: i32, %arg1: memref<8x128xf32, #tpu.memory_space<vmem>>, %arg2: memref<128x8xf32, #tpu.memory_space<vmem>>, %arg3: memref<128x1xf32, #tpu.memory_space<vmem>>, %arg4: memref<128x128xbf16, #tpu.memory_space<vmem>>, %arg5: memref<128x1xf32, #tpu.memory_space<vmem>>, %arg6: memref<1x128xbf16, #tpu.memory_space<vmem>>, %arg7: memref<1x1xf32, #tpu.memory_space<vmem>>, %arg8: memref<1x128xf32, #tpu.memory_space<vmem>>) attributes {dimension_semantics = [#tpu.dimension_semantics<parallel>], iteration_bounds = array<i64: 1>, scalar_prefetch = 0 : i64, scratch_operands = 0 : i64, tpu.core_type = #tpu.core_type<tc>, window_params = [{transform_indices = @transform_0, window_bounds = array<i64: 8, 128>}, {pipeline_mode = #tpu.pipeline_mode<synchronous>, transform_indices = @transform_1, window_bounds = array<i64: 128, 8>}, {pipeline_mode = #tpu.pipeline_mode<synchronous>, transform_indices = @transform_2, window_bounds = array<i64: 128, 1>}, {pipeline_mode = #tpu.pipeline_mode<synchronous>, transform_indices = @transform_3, window_bounds = array<i64: 128, 128>}, {pipeline_mode = #tpu.pipeline_mode<synchronous>, transform_indices = @transform_4, window_bounds = array<i64: 128, 1>}, {pipeline_mode = #tpu.pipeline_mode<synchronous>, transform_indices = @transform_5, window_bounds = array<i64: 1, 128>}, {pipeline_mode = #tpu.pipeline_mode<synchronous>, transform_indices = @transform_6, window_bounds = array<i64: 1, 1>}, {transform_indices = @transform_7, window_bounds = array<i64: 1, 128>}]} {
    %c0 = arith.constant 0 : index
    %c0_0 = arith.constant 0 : index
    %0 = vector.load %arg2[%c0, %c0_0] : memref<128x8xf32, #tpu.memory_space<vmem>>, vector<128x8xf32>
    %c0_1 = arith.constant 0 : index
    %c0_2 = arith.constant 0 : index
    %1 = vector.load %arg1[%c0_1, %c0_2] : memref<8x128xf32, #tpu.memory_space<vmem>>, vector<8x128xf32>
    %cst = arith.constant dense<0.000000e+00> : vector<128x128xf32>
    %2 = tpu.matmul %0, %1, %cst {dimension_numbers = #tpu.dot_dimension_numbers<[1], [0], [0], [1], [0, 0, 1, 1], [], []>} : vector<128x8xf32>, vector<8x128xf32>, vector<128x128xf32> -> vector<128x128xf32>
    %c0_3 = arith.constant 0 : index
    %c0_4 = arith.constant 0 : index
    %3 = vector.load %arg3[%c0_3, %c0_4] : memref<128x1xf32, #tpu.memory_space<vmem>>, vector<128x1xf32>
    %4 = vector.broadcast %3 : vector<128x1xf32> to vector<128x128xf32>
    %5 = arith.addf %2, %4 : vector<128x128xf32>
    %cst_5 = arith.constant 0.000000e+00 : f32
    %6 = vector.broadcast %cst_5 : f32 to vector<128x128xf32>
    %7 = arith.maximumf %5, %6 : vector<128x128xf32>
    %c0_6 = arith.constant 0 : index
    %c0_7 = arith.constant 0 : index
    %8 = vector.load %arg4[%c0_6, %c0_7] : memref<128x128xbf16, #tpu.memory_space<vmem>>, vector<128x128xbf16>
    %9 = arith.truncf %7 : vector<128x128xf32> to vector<128x128xbf16>
    %cst_8 = arith.constant dense<0.000000e+00> : vector<128x128xf32>
    %10 = tpu.matmul %8, %9, %cst_8 {dimension_numbers = #tpu.dot_dimension_numbers<[1], [0], [0], [1], [0, 0, 1, 1], [], []>} : vector<128x128xbf16>, vector<128x128xbf16>, vector<128x128xf32> -> vector<128x128xf32>
    %c0_9 = arith.constant 0 : index
    %c0_10 = arith.constant 0 : index
    %11 = vector.load %arg5[%c0_9, %c0_10] : memref<128x1xf32, #tpu.memory_space<vmem>>, vector<128x1xf32>
    %12 = vector.broadcast %11 : vector<128x1xf32> to vector<128x128xf32>
    %13 = arith.addf %10, %12 : vector<128x128xf32>
    %cst_11 = arith.constant 0.000000e+00 : f32
    %14 = vector.broadcast %cst_11 : f32 to vector<128x128xf32>
    %15 = arith.maximumf %13, %14 : vector<128x128xf32>
    %c0_12 = arith.constant 0 : index
    %c0_13 = arith.constant 0 : index
    %16 = vector.load %arg6[%c0_12, %c0_13] : memref<1x128xbf16, #tpu.memory_space<vmem>>, vector<1x128xbf16>
    %17 = arith.truncf %15 : vector<128x128xf32> to vector<128x128xbf16>
    %cst_14 = arith.constant dense<0.000000e+00> : vector<1x128xf32>
    %18 = tpu.matmul %16, %17, %cst_14 {dimension_numbers = #tpu.dot_dimension_numbers<[1], [0], [0], [1], [0, 0, 1, 1], [], []>} : vector<1x128xbf16>, vector<128x128xbf16>, vector<1x128xf32> -> vector<1x128xf32>
    %c0_15 = arith.constant 0 : index
    %c0_16 = arith.constant 0 : index
    %19 = vector.load %arg7[%c0_15, %c0_16] : memref<1x1xf32, #tpu.memory_space<vmem>>, vector<1x1xf32>
    %20 = vector.broadcast %19 : vector<1x1xf32> to vector<1x128xf32>
    %21 = arith.addf %18, %20 : vector<1x128xf32>
    %c0_17 = arith.constant 0 : index
    %c0_18 = arith.constant 0 : index
    %22 = vector.load %arg8[%c0_17, %c0_18] : memref<1x128xf32, #tpu.memory_space<vmem>>, vector<1x128xf32>
    tpu.vector_store %arg8[%c0_17, %c0_18], %21 {strides = array<i32>} : memref<1x128xf32, #tpu.memory_space<vmem>>, vector<1x128xf32>,
    return
  }
  func.func @transform_0(%arg0: i32) -> (i32, i32) {
    %c0_i32 = arith.constant 0 : i32
    %c0_i32_0 = arith.constant 0 : i32
    return %c0_i32, %arg0 : i32, i32
  }
  func.func @transform_1(%arg0: i32) -> (i32, i32) {
    %c0_i32 = arith.constant 0 : i32
    %c0_i32_0 = arith.constant 0 : i32
    %c0_i32_1 = arith.constant 0 : i32
    return %c0_i32, %c0_i32_0 : i32, i32
  }
  func.func @transform_2(%arg0: i32) -> (i32, i32) {
    %c0_i32 = arith.constant 0 : i32
    %c0_i32_0 = arith.constant 0 : i32
    %c0_i32_1 = arith.constant 0 : i32
    return %c0_i32, %c0_i32_0 : i32, i32
  }
  func.func @transform_3(%arg0: i32) -> (i32, i32) {
    %c0_i32 = arith.constant 0 : i32
    %c0_i32_0 = arith.constant 0 : i32
    %c0_i32_1 = arith.constant 0 : i32
    return %c0_i32, %c0_i32_0 : i32, i32
  }
  func.func @transform_4(%arg0: i32) -> (i32, i32) {
    %c0_i32 = arith.constant 0 : i32
    %c0_i32_0 = arith.constant 0 : i32
    %c0_i32_1 = arith.constant 0 : i32
    return %c0_i32, %c0_i32_0 : i32, i32
  }
  func.func @transform_5(%arg0: i32) -> (i32, i32) {
    %c0_i32 = arith.constant 0 : i32
    %c0_i32_0 = arith.constant 0 : i32
    %c0_i32_1 = arith.constant 0 : i32
    return %c0_i32, %c0_i32_0 : i32, i32
  }
  func.func @transform_6(%arg0: i32) -> (i32, i32) {
    %c0_i32 = arith.constant 0 : i32
    %c0_i32_0 = arith.constant 0 : i32
    %c0_i32_1 = arith.constant 0 : i32
    return %c0_i32, %c0_i32_0 : i32, i32
  }
  func.func @transform_7(%arg0: i32) -> (i32, i32) {
    %c0_i32 = arith.constant 0 : i32
    %c0_i32_0 = arith.constant 0 : i32
    return %c0_i32, %arg0 : i32, i32
  }
}

</mosaic_0001>

<llo_original>
// kernel: tpu_custom_call.1
$region0: #{tpu_custom_call.1}
  #allocation0 [shape = 'u32[]', space=smem, size = 0x4, offset = 0x4, fixed_abs, tag = 'smem constant byte address 0x4 - core index']
  #allocation1 [shape = 'u32[72,128]{1,0:T(1,128)}', space=vmem, size = 0x9000, scoped, tag = 'internal scratch']
  #allocation2 [shape = 'f32[1,1]{1,0:T(1,128)S(1)}', space=vmem, size = 0x200, scoped, tag = 'scoped memory for tpu_custom_call.1']
  %s0 = inlined_call_operand.vmem [shape: f32[8,128], index: 0, kind: input, shape index: {}]
  %s1 = inlined_call_operand.vmem [shape: f32[128,8], index: 1, kind: input, shape index: {}]
  %s2 = inlined_call_operand.vmem [shape: f32[128,1], index: 2, kind: input, shape index: {}]
  %s3 = inlined_call_operand.vmem [shape: bf16[128,128], index: 3, kind: input, shape index: {}]
  %s4 = inlined_call_operand.vmem [shape: f32[128,1], index: 4, kind: input, shape index: {}]
  %s5 = inlined_call_operand.vmem [shape: bf16[1,128], index: 5, kind: input, shape index: {}]
  %s6 = inlined_call_operand.<no memory space> [shape: f32[1,1], index: 6, kind: input, shape index: {}]
  %s7 = inlined_call_operand.hbm [shape: f32[1,128], index: 7, kind: output, shape index: {}]
  %s8 = sld [smem:[#allocation0]]
  $region38: #{tpu_custom_call.1} parent=0
    _
  %s10 = ssub.s32 1, %s8
  %s11 = scalar_select 0, %s10, %s8
  %v12 = vstv %s6
  %13 = vst [vmem:[#allocation2] sm:$0x1] %v12
  $region1: #{tpu_custom_call.1} parent=0
    #allocation3 [shape = 'u8[512]{0}', space=vmem, size = 0x400, scoped, tag = 'output window, operand 0, single buffered']
    #allocation4 [shape = 's32[1]{0}', space=sflag, size = 0x4, scoped, tag = 'scoped memory for tpu_custom_call.1']
    %14 = vsyncpa [#allocation4], 0
    // Predicated region
    $region2: #{tpu_custom_call.1} parent=1 // pred_check
      _
    $region3: #{tpu_custom_call.1} parent=1 // pred_check_branch
      %16 = sbr.rel (0) target = $region5
    $region4: #{tpu_custom_call.1} parent=1 // pred_region
      _
    $region5: #{tpu_custom_call.1} parent=1 // pred_fallthru
      _
    // Predicated region
    $region6: #{tpu_custom_call.1} parent=1 // pred_check
      _
    $region7: #{tpu_custom_call.1} parent=1 // pred_check_branch
      %18 = sbr.rel (0) target = $region9
    $region8: #{tpu_custom_call.1} parent=1 // pred_region
      _
    $region9: #{tpu_custom_call.1} parent=1 // pred_fallthru
      _
    // Predicated region
    $region10: #{tpu_custom_call.1} parent=1 // pred_check
      _
    $region11: #{tpu_custom_call.1} parent=1 // pred_check_branch
      %20 = sbr.rel (0) target = $region13
    $region12: #{tpu_custom_call.1} parent=1 // pred_region
      _
    $region13: #{tpu_custom_call.1} parent=1 // pred_fallthru
      _
    // Predicated region
    $region14: #{tpu_custom_call.1} parent=1 // pred_check
      _
    $region15: #{tpu_custom_call.1} parent=1 // pred_check_branch
      %22 = sbr.rel (0) target = $region17
    $region16: #{tpu_custom_call.1} parent=1 // pred_region
      _
    $region17: #{tpu_custom_call.1} parent=1 // pred_fallthru
      _
    // Predicated region
    $region18: #{tpu_custom_call.1} parent=1 // pred_check
      _
    $region19: #{tpu_custom_call.1} parent=1 // pred_check_branch
      %24 = sbr.rel (0) target = $region21
    $region20: #{tpu_custom_call.1} parent=1 // pred_region
      _
    $region21: #{tpu_custom_call.1} parent=1 // pred_fallthru
      _
    // Predicated region
    $region22: #{tpu_custom_call.1} parent=1 // pred_check
      _
    $region23: #{tpu_custom_call.1} parent=1 // pred_check_branch
      %26 = sbr.rel (0) target = $region25
    $region24: #{tpu_custom_call.1} parent=1 // pred_region
      _
    $region25: #{tpu_custom_call.1} parent=1 // pred_fallthru
      _
    // Predicated region
    $region26: #{tpu_custom_call.1} parent=1 // pred_check
      _
    $region27: #{tpu_custom_call.1} parent=1 // pred_check_branch
      %28 = sbr.rel (0) target = $region29
    $region28: #{tpu_custom_call.1} parent=1 // pred_region
      _
    $region29: #{tpu_custom_call.1} parent=1 // pred_fallthru
      _
    %v29 = vld [vmem:[%s1] sm:$0xff]
    %v30 = vld [vmem:[%s1 + $0x8] sm:$0xff]
    %v31 = vld [vmem:[%s1 + $0x10] sm:$0xff]
    %v32 = vld [vmem:[%s1 + $0x18] sm:$0xff]
    %v33 = vld [vmem:[%s1 + $0x20] sm:$0xff]
    %v34 = vld [vmem:[%s1 + $0x28] sm:$0xff]
    %v35 = vld [vmem:[%s1 + $0x30] sm:$0xff]
    %v36 = vld [vmem:[%s1 + $0x38] sm:$0xff]
    %v37 = vld [vmem:[%s1 + $0x40] sm:$0xff]
    %v38 = vld [vmem:[%s1 + $0x48] sm:$0xff]
    %v39 = vld [vmem:[%s1 + $0x50] sm:$0xff]
    %v40 = vld [vmem:[%s1 + $0x58] sm:$0xff]
    %v41 = vld [vmem:[%s1 + $0x60] sm:$0xff]
    %v42 = vld [vmem:[%s1 + $0x68] sm:$0xff]
    %v43 = vld [vmem:[%s1 + $0x70] sm:$0xff]
    %v44 = vld [vmem:[%s1 + $0x78] sm:$0xff]
    %v45 = vld [vmem:[%s0] sm:$0xff]
    %v46 = vld [vmem:[%s2] sm:$0xff]
    %v47 = vld [vmem:[%s2 + $0x8] sm:$0xff]
    %v48 = vld [vmem:[%s2 + $0x10] sm:$0xff]
    %v49 = vld [vmem:[%s2 + $0x18] sm:$0xff]
    %v50 = vld [vmem:[%s2 + $0x20] sm:$0xff]
    %v51 = vld [vmem:[%s2 + $0x28] sm:$0xff]
    %v52 = vld [vmem:[%s2 + $0x30] sm:$0xff]
    %v53 = vld [vmem:[%s2 + $0x38] sm:$0xff]
    %v54 = vld [vmem:[%s2 + $0x40] sm:$0xff]
    %v55 = vld [vmem:[%s2 + $0x48] sm:$0xff]
    %v56 = vld [vmem:[%s2 + $0x50] sm:$0xff]
    %v57 = vld [vmem:[%s2 + $0x58] sm:$0xff]
    %v58 = vld [vmem:[%s2 + $0x60] sm:$0xff]
    %v59 = vld [vmem:[%s2 + $0x68] sm:$0xff]
    %v60 = vld [vmem:[%s2 + $0x70] sm:$0xff]
    %v61 = vld [vmem:[%s2 + $0x78] sm:$0xff]
    %63 = vset.pattern.permute.xlu0 0
    %64 = vperm.xlu0 %63, %v46
    %v65 = vpop.permute.xlu0 %64
    %68 = vset.pattern.permute.xlu0 0
    %69 = vperm.xlu0 %68, %v47
    %v70 = vpop.permute.xlu0 %69
    %73 = vset.pattern.permute.xlu0 0
    %74 = vperm.xlu0 %73, %v48
    %v75 = vpop.permute.xlu0 %74
    %78 = vset.pattern.permute.xlu0 0
    %79 = vperm.xlu0 %78, %v49
    %v80 = vpop.permute.xlu0 %79
    %83 = vset.pattern.permute.xlu0 0
    %84 = vperm.xlu0 %83, %v50
    %v85 = vpop.permute.xlu0 %84
    %88 = vset.pattern.permute.xlu0 0
    %89 = vperm.xlu0 %88, %v51
    %v90 = vpop.permute.xlu0 %89
    %93 = vset.pattern.permute.xlu0 0
    %94 = vperm.xlu0 %93, %v52
    %v95 = vpop.permute.xlu0 %94
    %98 = vset.pattern.permute.xlu0 0
    %99 = vperm.xlu0 %98, %v53
    %v100 = vpop.permute.xlu0 %99
    %103 = vset.pattern.permute.xlu0 0
    %104 = vperm.xlu0 %103, %v54
    %v105 = vpop.permute.xlu0 %104
    %108 = vset.pattern.permute.xlu0 0
    %109 = vperm.xlu0 %108, %v55
    %v110 = vpop.permute.xlu0 %109
    %113 = vset.pattern.permute.xlu0 0
    %114 = vperm.xlu0 %113, %v56
    %v115 = vpop.permute.xlu0 %114
    %118 = vset.pattern.permute.xlu0 0
    %119 = vperm.xlu0 %118, %v57
    %v120 = vpop.permute.xlu0 %119
    %123 = vset.pattern.permute.xlu0 0
    %124 = vperm.xlu0 %123, %v58
    %v125 = vpop.permute.xlu0 %124
    %128 = vset.pattern.permute.xlu0 0
    %129 = vperm.xlu0 %128, %v59
    %v130 = vpop.permute.xlu0 %129
    %133 = vset.pattern.permute.xlu0 0
    %134 = vperm.xlu0 %133, %v60
    %v135 = vpop.permute.xlu0 %134
    %138 = vset.pattern.permute.xlu0 0
    %139 = vperm.xlu0 %138, %v61
    %v140 = vpop.permute.xlu0 %139
    %vm142 = vcmask 64512
    %v144 = vsel %vm142, %v29, 0
    %v147 = vsel %vm142, %v30, 0
    %v150 = vsel %vm142, %v31, 0
    %v153 = vsel %vm142, %v32, 0
    %v156 = vsel %vm142, %v33, 0
    %v159 = vsel %vm142, %v34, 0
    %v162 = vsel %vm142, %v35, 0
    %v165 = vsel %vm142, %v36, 0
    %v168 = vsel %vm142, %v37, 0
    %v171 = vsel %vm142, %v38, 0
    %v174 = vsel %vm142, %v39, 0
    %v177 = vsel %vm142, %v40, 0
    %v180 = vsel %vm142, %v41, 0
    %v183 = vsel %vm142, %v42, 0
    %v186 = vsel %vm142, %v43, 0
    %v189 = vsel %vm142, %v44, 0
    %191 = vmatpush.msra.mxu0 0.0
    %192 = vmatpush.msra.mxu0 0.0
    %193 = vmatpush.msra.mxu0 0.0
    %194 = vmatpush.msra.mxu0 0.0
    %195 = vmatpush.msra.mxu0 0.0
    %196 = vmatpush.msra.mxu0 0.0
    %197 = vmatpush.msra.mxu0 0.0
    %198 = vmatpush.msra.mxu0 0.0
    %199 = vmatpush.msra.mxu0 0.0
    %200 = vmatpush.msra.mxu0 0.0
    %201 = vmatpush.msra.mxu0 0.0
    %202 = vmatpush.msra.mxu0 0.0
    %203 = vmatpush.msra.mxu0 0.0
    %204 = vmatpush.msra.mxu0 0.0
    %205 = vmatpush.msra.mxu0 0.0
    %206 = vmatpush.msra.mxu0 %v45
    %207 = vmatmul.f32.gmra.mxu0 %v144
    %v208 = vpop.f32.mrf.mxu0
    %v209 = vadd.f32 %v65, %v208
    %210 = vmatmul.f32.gmra.mxu0 %v147
    %v211 = vpop.f32.mrf.mxu0
    %v212 = vadd.f32 %v70, %v211
    %213 = vmatmul.f32.gmra.mxu0 %v150
    %v214 = vpop.f32.mrf.mxu0
    %v215 = vadd.f32 %v75, %v214
    %216 = vmatmul.f32.gmra.mxu0 %v153
    %v217 = vpop.f32.mrf.mxu0
    %v218 = vadd.f32 %v80, %v217
    %219 = vmatmul.f32.gmra.mxu0 %v156
    %v220 = vpop.f32.mrf.mxu0
    %v221 = vadd.f32 %v85, %v220
    %222 = vmatmul.f32.gmra.mxu0 %v159
    %v223 = vpop.f32.mrf.mxu0
    %v224 = vadd.f32 %v90, %v223
    %225 = vmatmul.f32.gmra.mxu0 %v162
    %v226 = vpop.f32.mrf.mxu0
    %v227 = vadd.f32 %v95, %v226
    %228 = vmatmul.f32.gmra.mxu0 %v165
    %v229 = vpop.f32.mrf.mxu0
    %v230 = vadd.f32 %v100, %v229
    %231 = vmatmul.f32.gmra.mxu0 %v168
    %v232 = vpop.f32.mrf.mxu0
    %v233 = vadd.f32 %v105, %v232
    %234 = vmatmul.f32.gmra.mxu0 %v171
    %v235 = vpop.f32.mrf.mxu0
    %v236 = vadd.f32 %v110, %v235
    %237 = vmatmul.f32.gmra.mxu0 %v174
    %v238 = vpop.f32.mrf.mxu0
    %v239 = vadd.f32 %v115, %v238
    %240 = vmatmul.f32.gmra.mxu0 %v177
    %v241 = vpop.f32.mrf.mxu0
    %v242 = vadd.f32 %v120, %v241
    %243 = vmatmul.f32.gmra.mxu0 %v180
    %v244 = vpop.f32.mrf.mxu0
    %v245 = vadd.f32 %v125, %v244
    %246 = vmatmul.f32.gmra.mxu0 %v183
    %v247 = vpop.f32.mrf.mxu0
    %v248 = vadd.f32 %v130, %v247
    %249 = vmatmul.f32.gmra.mxu0 %v186
    %v250 = vpop.f32.mrf.mxu0
    %v251 = vadd.f32 %v135, %v250
    %252 = vmatmul.f32.gmra.mxu0 %v189
    %v253 = vpop.f32.mrf.mxu0
    %v254 = vadd.f32 %v140, %v253
    %255 = vdwg.mxu0
    %v256 = vmax.f32 %v209, 0.0
    %v257 = vmax.f32 %v212, 0.0
    %v258 = vmax.f32 %v215, 0.0
    %v259 = vmax.f32 %v218, 0.0
    %v260 = vmax.f32 %v221, 0.0
    %v261 = vmax.f32 %v224, 0.0
    %v262 = vmax.f32 %v227, 0.0
    %v263 = vmax.f32 %v230, 0.0
    %v264 = vmax.f32 %v233, 0.0
    %v265 = vmax.f32 %v236, 0.0
    %v266 = vmax.f32 %v239, 0.0
    %v267 = vmax.f32 %v242, 0.0
    %v268 = vmax.f32 %v245, 0.0
    %v269 = vmax.f32 %v248, 0.0
    %v270 = vmax.f32 %v251, 0.0
    %v271 = vmax.f32 %v254, 0.0
    %v272 = vld [vmem:[%s3] sm:$0xf]
    %v273 = vld [vmem:[%s3 + $0x4] sm:$0xf]
    %v274 = vld [vmem:[%s3 + $0x8] sm:$0xf]
    %v275 = vld [vmem:[%s3 + $0xc] sm:$0xf]
    %v276 = vld [vmem:[%s3 + $0x10] sm:$0xf]
    %v277 = vld [vmem:[%s3 + $0x14] sm:$0xf]
    %v278 = vld [vmem:[%s3 + $0x18] sm:$0xf]
    %v279 = vld [vmem:[%s3 + $0x1c] sm:$0xf]
    %v280 = vld [vmem:[%s3 + $0x20] sm:$0xf]
    %v281 = vld [vmem:[%s3 + $0x24] sm:$0xf]
    %v282 = vld [vmem:[%s3 + $0x28] sm:$0xf]
    %v283 = vld [vmem:[%s3 + $0x2c] sm:$0xf]
    %v284 = vld [vmem:[%s3 + $0x30] sm:$0xf]
    %v285 = vld [vmem:[%s3 + $0x34] sm:$0xf]
    %v286 = vld [vmem:[%s3 + $0x38] sm:$0xf]
    %v287 = vld [vmem:[%s3 + $0x3c] sm:$0xf]
    %v288 = vpack.c.bf16 %v257, %v256
    %v289 = vpack.c.bf16 %v259, %v258
    %v290 = vpack.c.bf16 %v261, %v260
    %v291 = vpack.c.bf16 %v263, %v262
    %v292 = vpack.c.bf16 %v265, %v264
    %v293 = vpack.c.bf16 %v267, %v266
    %v294 = vpack.c.bf16 %v269, %v268
    %v295 = vpack.c.bf16 %v271, %v270
    %v296 = vld [vmem:[%s4] sm:$0xff]
    %v297 = vld [vmem:[%s4 + $0x8] sm:$0xff]
    %v298 = vld [vmem:[%s4 + $0x10] sm:$0xff]
    %v299 = vld [vmem:[%s4 + $0x18] sm:$0xff]
    %v300 = vld [vmem:[%s4 + $0x20] sm:$0xff]
    %v301 = vld [vmem:[%s4 + $0x28] sm:$0xff]
    %v302 = vld [vmem:[%s4 + $0x30] sm:$0xff]
    %v303 = vld [vmem:[%s4 + $0x38] sm:$0xff]
    %v304 = vld [vmem:[%s4 + $0x40] sm:$0xff]
    %v305 = vld [vmem:[%s4 + $0x48] sm:$0xff]
    %v306 = vld [vmem:[%s4 + $0x50] sm:$0xff]
    %v307 = vld [vmem:[%s4 + $0x58] sm:$0xff]
    %v308 = vld [vmem:[%s4 + $0x60] sm:$0xff]
    %v309 = vld [vmem:[%s4 + $0x68] sm:$0xff]
    %v310 = vld [vmem:[%s4 + $0x70] sm:$0xff]
    %v311 = vld [vmem:[%s4 + $0x78] sm:$0xff]
    %313 = vset.pattern.permute.xlu0 0
    %314 = vperm.xlu0 %313, %v296
    %v315 = vpop.permute.xlu0 %314
    %318 = vset.pattern.permute.xlu0 0
    %319 = vperm.xlu0 %318, %v297
    %v320 = vpop.permute.xlu0 %319
    %323 = vset.pattern.permute.xlu0 0
    %324 = vperm.xlu0 %323, %v298
    %v325 = vpop.permute.xlu0 %324
    %328 = vset.pattern.permute.xlu0 0
    %329 = vperm.xlu0 %328, %v299
    %v330 = vpop.permute.xlu0 %329
    %333 = vset.pattern.permute.xlu0 0
    %334 = vperm.xlu0 %333, %v300
    %v335 = vpop.permute.xlu0 %334
    %338 = vset.pattern.permute.xlu0 0
    %339 = vperm.xlu0 %338, %v301
    %v340 = vpop.permute.xlu0 %339
    %343 = vset.pattern.permute.xlu0 0
    %344 = vperm.xlu0 %343, %v302
    %v345 = vpop.permute.xlu0 %344
    %348 = vset.pattern.permute.xlu0 0
    %349 = vperm.xlu0 %348, %v303
    %v350 = vpop.permute.xlu0 %349
    %353 = vset.pattern.permute.xlu0 0
    %354 = vperm.xlu0 %353, %v304
    %v355 = vpop.permute.xlu0 %354
    %358 = vset.pattern.permute.xlu0 0
    %359 = vperm.xlu0 %358, %v305
    %v360 = vpop.permute.xlu0 %359
    %363 = vset.pattern.permute.xlu0 0
    %364 = vperm.xlu0 %363, %v306
    %v365 = vpop.permute.xlu0 %364
    %368 = vset.pattern.permute.xlu0 0
    %369 = vperm.xlu0 %368, %v307
    %v370 = vpop.permute.xlu0 %369
    %373 = vset.pattern.permute.xlu0 0
    %374 = vperm.xlu0 %373, %v308
    %v375 = vpop.permute.xlu0 %374
    %378 = vset.pattern.permute.xlu0 0
    %379 = vperm.xlu0 %378, %v309
    %v380 = vpop.permute.xlu0 %379
    %383 = vset.pattern.permute.xlu0 0
    %384 = vperm.xlu0 %383, %v310
    %v385 = vpop.permute.xlu0 %384
    %388 = vset.pattern.permute.xlu0 0
    %389 = vperm.xlu0 %388, %v311
    %v390 = vpop.permute.xlu0 %389
    %v408 = vunpack.c.l.b16 %v272
    %v409 = vunpack.c.l.b16 %v273
    %v410 = vunpack.c.l.b16 %v274
    %v411 = vunpack.c.l.b16 %v275
    %v412 = vunpack.c.l.b16 %v276
    %v413 = vunpack.c.l.b16 %v277
    %v414 = vunpack.c.l.b16 %v278
    %v415 = vunpack.c.l.b16 %v279
    %v416 = vunpack.c.l.b16 %v280
    %v417 = vunpack.c.l.b16 %v281
    %v418 = vunpack.c.l.b16 %v282
    %v419 = vunpack.c.l.b16 %v283
    %v420 = vunpack.c.l.b16 %v284
    %v421 = vunpack.c.l.b16 %v285
    %v422 = vunpack.c.l.b16 %v286
    %v423 = vunpack.c.l.b16 %v287
    %v424 = vpack.c.b16 %v409, %v408
    %v425 = vpack.c.b16 %v411, %v410
    %v426 = vpack.c.b16 %v413, %v412
    %v427 = vpack.c.b16 %v415, %v414
    %v428 = vpack.c.b16 %v417, %v416
    %v429 = vpack.c.b16 %v419, %v418
    %v430 = vpack.c.b16 %v421, %v420
    %v431 = vpack.c.b16 %v423, %v422
    %440 = vmatpush.bf16.msra.mxu0 %v295
    %441 = vmatpush.bf16.msra.mxu0 %v294
    %442 = vmatpush.bf16.msra.mxu0 %v293
    %443 = vmatpush.bf16.msra.mxu0 %v292
    %444 = vmatpush.bf16.msra.mxu0 %v291
    %445 = vmatpush.bf16.msra.mxu0 %v290
    %446 = vmatpush.bf16.msra.mxu0 %v289
    %447 = vmatpush.bf16.msra.mxu0 %v288
    %448 = vmatmul.bf16.gmra.mxu0 %v424
    %v449 = vpop.f32.mrf.mxu0
    %v450 = vadd.f32 %v315, %v449
    %v451 = vpop.f32.mrf.mxu0
    %v452 = vadd.f32 %v320, %v451
    %453 = vmatmul.bf16.gmra.mxu0 %v425
    %v454 = vpop.f32.mrf.mxu0
    %v455 = vadd.f32 %v325, %v454
    %v456 = vpop.f32.mrf.mxu0
    %v457 = vadd.f32 %v330, %v456
    %458 = vmatmul.bf16.gmra.mxu0 %v426
    %v459 = vpop.f32.mrf.mxu0
    %v460 = vadd.f32 %v335, %v459
    %v461 = vpop.f32.mrf.mxu0
    %v462 = vadd.f32 %v340, %v461
    %463 = vmatmul.bf16.gmra.mxu0 %v427
    %v464 = vpop.f32.mrf.mxu0
    %v465 = vadd.f32 %v345, %v464
    %v466 = vpop.f32.mrf.mxu0
    %v467 = vadd.f32 %v350, %v466
    %468 = vmatmul.bf16.gmra.mxu0 %v428
    %v469 = vpop.f32.mrf.mxu0
    %v470 = vadd.f32 %v355, %v469
    %v471 = vpop.f32.mrf.mxu0
    %v472 = vadd.f32 %v360, %v471
    %473 = vmatmul.bf16.gmra.mxu0 %v429
    %v474 = vpop.f32.mrf.mxu0
    %v475 = vadd.f32 %v365, %v474
    %v476 = vpop.f32.mrf.mxu0
    %v477 = vadd.f32 %v370, %v476
    %478 = vmatmul.bf16.gmra.mxu0 %v430
    %v479 = vpop.f32.mrf.mxu0
    %v480 = vadd.f32 %v375, %v479
    %v481 = vpop.f32.mrf.mxu0
    %v482 = vadd.f32 %v380, %v481
    %483 = vmatmul.bf16.gmra.mxu0 %v431
    %v484 = vpop.f32.mrf.mxu0
    %v485 = vadd.f32 %v385, %v484
    %v486 = vpop.f32.mrf.mxu0
    %v487 = vadd.f32 %v390, %v486
    %488 = vdwg.mxu0
    %v489 = vmax.f32 %v450, 0.0
    %v490 = vmax.f32 %v452, 0.0
    %v491 = vmax.f32 %v455, 0.0
    %v492 = vmax.f32 %v457, 0.0
    %v493 = vmax.f32 %v460, 0.0
    %v494 = vmax.f32 %v462, 0.0
    %v495 = vmax.f32 %v465, 0.0
    %v496 = vmax.f32 %v467, 0.0
    %v497 = vmax.f32 %v470, 0.0
    %v498 = vmax.f32 %v472, 0.0
    %v499 = vmax.f32 %v475, 0.0
    %v500 = vmax.f32 %v477, 0.0
    %v501 = vmax.f32 %v480, 0.0
    %v502 = vmax.f32 %v482, 0.0
    %v503 = vmax.f32 %v485, 0.0
    %v504 = vmax.f32 %v487, 0.0
    %v505 = vld [vmem:[%s5] sm:$0x1]
    %v506 = vpack.c.bf16 %v490, %v489
    %v507 = vpack.c.bf16 %v492, %v491
    %v508 = vpack.c.bf16 %v494, %v493
    %v509 = vpack.c.bf16 %v496, %v495
    %v510 = vpack.c.bf16 %v498, %v497
    %v511 = vpack.c.bf16 %v500, %v499
    %v512 = vpack.c.bf16 %v502, %v501
    %v513 = vpack.c.bf16 %v504, %v503
    %v514 = vld [vmem:[#allocation2] sm:$0x1]
    %516 = vset.pattern.permute.xlu0 0
    %517 = vperm.xlu0 %516, %v514
    %v518 = vpop.permute.xlu0 %517
    %v520 = vperm.slane %v518, 0
    %521 = vmatpush.bf16.msra.mxu0 %v513
    %522 = vmatpush.bf16.msra.mxu0 %v512
    %523 = vmatpush.bf16.msra.mxu0 %v511
    %524 = vmatpush.bf16.msra.mxu0 %v510
    %525 = vmatpush.bf16.msra.mxu0 %v509
    %526 = vmatpush.bf16.msra.mxu0 %v508
    %527 = vmatpush.bf16.msra.mxu0 %v507
    %528 = vmatpush.bf16.msra.mxu0 %v506
    %529 = vmatmul.bf16.gmra.mxu0 %v505
    %v530 = vpop.f32.mrf.mxu0
    %v531 = vadd.f32 %v520, %v530
    %v532 = vpop.f32.mrf.mxu0
    %533 = vdwg.mxu0
    %534 = vst [vmem:[#allocation3] sm:$0x1] %v531
    // Predicated region
    $region30: #{tpu_custom_call.1} parent=1 // pred_check
      _
    $region31: #{tpu_custom_call.1} parent=1 // pred_check_branch
      %536 = sbr.rel (0) target = $region33
    $region32: #{tpu_custom_call.1} parent=1 // pred_region
      %538 = vsyncadd [#allocation4], 0
      %s540 = sshll.u32 [#allocation3], 4
      %s541 = int_to_ptr.vmem [resolvable:$true] %s540
      %s542 = sshll.u32 %s7, 4
      %s543 = int_to_ptr.hbm [resolvable:$true] %s542
      %545 = dma.vmem_to_hbm [thread:$0]  %s541, 16, %s543, [#allocation4]
    $region33: #{tpu_custom_call.1} parent=1 // pred_fallthru
      _
    // Predicated region
    $region34: #{tpu_custom_call.1} parent=1 // pred_check
      _
    $region35: #{tpu_custom_call.1} parent=1 // pred_check_branch
      %547 = sbr.rel (0) target = $region37
    $region36: #{tpu_custom_call.1} parent=1 // pred_region
      %549 = dma.done [#allocation4], 16
    $region37: #{tpu_custom_call.1} parent=1 // pred_fallthru
      _
    %550 = vsyncpa [#allocation4], 1

</llo_original>
